<compile_context>
chip_gen: v7x
topology: tpu7x:2x2x1
jax: 0.10.0
libtpu: 0.0.40
codegen_flags: <defaults>
</compile_context>

<pallas_src>
import functools

import jax
import jax.numpy as jnp
from jax import lax
from jax.experimental import pallas as pl
from jax.experimental.pallas import tpu as pltpu


_EPS_SQ = 1e-24  # F.normalize clamps the norm at 1e-12; we clamp the squared norm.


def netvlad_kernel(x_ref, w_ref, c_ref, out_ref, acc_vlad, acc_asum, *,
                   tile_n, n_valid, n_total):
    # x_ref    : (1, D, TN) channel-major feature tile for one batch element
    # w_ref    : (K, D)     1x1-conv soft-assignment weight (bias=False), bf16
    # c_ref    : (K, D)     cluster centroids, f32
    # out_ref  : (1, K, D)  per-batch VLAD descriptor (flattened in the wrapper)
    # acc_vlad : (K, D) f32 scratch, accumulates sum_n a[k,n]*inv_norm[n]*x[d,n]
    # acc_asum : (K, 1) f32 scratch, accumulates sum_n a[k,n]
    n_idx = pl.program_id(1)

    @pl.when(n_idx == 0)
    def _init():
        acc_vlad[...] = jnp.zeros_like(acc_vlad)
        acc_asum[...] = jnp.zeros_like(acc_asum)

    x = x_ref[0]                                   # (D, TN), input dtype
    x_b = x.astype(jnp.bfloat16)                   # no-op when the input is bf16
    x_f = x.astype(jnp.float32)

    # Per-column L2 norm (encoder L2Norm).  The normalization is *folded* into
    # the small (K, TN) tensors below instead of materializing xn = x / ||x||.
    inv_norm = lax.rsqrt(
        jnp.maximum(jnp.sum(x_f * x_f, axis=0, keepdims=True), _EPS_SQ))   # (1, TN)

    # Soft assignment: s = (W @ x) * inv_norm == W @ (x / ||x||)  (MXU, f32 acc).
    s = jnp.dot(w_ref[...], x_b, preferred_element_type=jnp.float32)       # (K, TN)
    s = s * inv_norm

    # Softmax over clusters (sublane axis).
    s = s - jnp.max(s, axis=0, keepdims=True)
    e = jnp.exp(s)
    a = e * pl.reciprocal(jnp.sum(e, axis=0, keepdims=True), approx=True)  # (K, TN)

    # Mask spatial padding so it never touches the accumulators.
    if n_total != n_valid:
        col = n_idx * tile_n + lax.broadcasted_iota(jnp.int32, (1, tile_n), 1)
        a = jnp.where(col < n_valid, a, 0.0)

    # Partial VLAD accumulation: acc_vlad += (a * inv_norm) @ x^T == a @ xn^T.
    a_scaled = (a * inv_norm).astype(jnp.bfloat16)
    acc_vlad[...] += lax.dot_general(
        a_scaled, x_b, (((1,), (1,)), ((), ())),
        preferred_element_type=jnp.float32)                                # (K, D)
    acc_asum[...] += jnp.sum(a, axis=1, keepdims=True)                     # (K, 1)

    @pl.when(n_idx == pl.num_programs(1) - 1)
    def _finalize():
        # vlad[k, d] = sum_n a[k, n] * (xn[d, n] - c[k, d])
        vlad = acc_vlad[...] - acc_asum[...] * c_ref[...].astype(jnp.float32)
        # Intra-normalization over the channel dim (per cluster).
        vlad = vlad * lax.rsqrt(
            jnp.maximum(jnp.sum(vlad * vlad, axis=1, keepdims=True), _EPS_SQ))
        # Global L2 normalization over the flattened (K*D) descriptor.
        vlad = vlad * lax.rsqrt(jnp.maximum(jnp.sum(vlad * vlad), _EPS_SQ))
        out_ref[0] = vlad.astype(out_ref.dtype)


def _block_budget_bytes():
    """Per-generation cap for one (D, TN) feature block (double-buffered)."""
    try:
        kind = jax.devices()[0].device_kind.lower()
    except Exception:
        kind = ""
    if "v5" in kind:
        return 6 << 20    # 16 MiB scoped-VMEM default
    if "v6" in kind:
        return 12 << 20   # 32 MiB scoped-VMEM default, 128 MiB physical
    if "v7" in kind:
        return 8 << 20    # 64 MiB physical VMEM per TC
    return 6 << 20        # conservative default


def _pick_spatial_tile(n_pad, d, itemsize, budget_bytes):
    """Largest spatial tile (multiple of 128, dividing n_pad) whose (D, TN)
    block stays under budget_bytes."""
    assert n_pad % 128 == 0
    if d * n_pad * itemsize <= budget_bytes:
        return n_pad
    tn = max((budget_bytes // (d * itemsize)) // 128 * 128, 128)
    tn = min(tn, n_pad)
    while n_pad % tn != 0:
        tn -= 128
    return max(tn, 128)


def netvlad_forward(feat_nchw, conv_w, centroids):
    """feat_nchw: (B, C, H, W) backbone feature map (NCHW, like PyTorch);
                  bf16 preferred (kernel is HBM-bound on this read).
    conv_w:    (K, C)  soft-assign 1x1 conv weight (1x1 kernel squeezed).
    centroids: (K, C)  cluster centroids.
    Returns (B, K*C) L2-normalized VLAD descriptors (f32)."""
    B, C, H, W = feat_nchw.shape
    K, D = centroids.shape
    assert C == D and conv_w.shape == (K, D)
    N = H * W

    # Free reshape — kernel contracts over the sublane (channel) axis.
    x = feat_nchw.reshape(B, D, N)

    # Pad the spatial axis to a lane-dense multiple of 128; padded columns are
    # masked inside the kernel before they reach the accumulators.
    n_pad = -(-N // 128) * 128
    if n_pad != N:
        x = jnp.pad(x, ((0, 0), (0, 0), (0, n_pad - N)))

    itemsize = jnp.dtype(x.dtype).itemsize
    tn = _pick_spatial_tile(n_pad, D, itemsize, _block_budget_bytes())
    n_tiles = n_pad // tn

    # Small parameters: soft-assign weight feeds the MXU as bf16 (one-time cast
    # of a tiny K x D parameter); centroids stay f32 (used once per batch).
    w_bf16 = conv_w.astype(jnp.bfloat16)
    c_f32 = centroids.astype(jnp.float32)

    # Explicit VMEM budget: double-buffered x tile + params + output + scratch,
    # with ~50% headroom and a 16 MiB floor (safe on every generation).
    vmem_bytes = int(1.5 * (
        2 * D * tn * itemsize       # x tile (double-buffered)
        + 2 * K * D * 2             # soft-assign weight (bf16)
        + 2 * K * D * 4             # centroids (f32)
        + 2 * K * D * 4             # output block (f32)
        + K * D * 4 + K * 128 * 4   # accumulators (lane-padded)
    ))
    vmem_bytes = max(vmem_bytes, 16 << 20)

    kernel = functools.partial(
        netvlad_kernel, tile_n=tn, n_valid=N, n_total=n_pad)

    out = pl.pallas_call(
        kernel,
        out_shape=jax.ShapeDtypeStruct((B, K, D), jnp.float32),
        grid_spec=pltpu.PrefetchScalarGridSpec(
            num_scalar_prefetch=0,
            grid=(B, n_tiles),
            in_specs=[
                pl.BlockSpec((1, D, tn), lambda b, n: (b, 0, n)),
                pl.BlockSpec((K, D), lambda b, n: (0, 0)),
                pl.BlockSpec((K, D), lambda b, n: (0, 0)),
            ],
            out_specs=pl.BlockSpec((1, K, D), lambda b, n: (b, 0, 0)),
            scratch_shapes=[
                pltpu.VMEM((K, D), jnp.float32),   # VLAD accumulator
                pltpu.VMEM((K, 1), jnp.float32),   # soft-assignment row sums
            ],
        ),
        compiler_params=pltpu.CompilerParams(
            dimension_semantics=("parallel", "arbitrary"),
            vmem_limit_bytes=vmem_bytes),
    )(x, w_bf16, c_f32)

    # vlad.view(B, -1): flatten clusters x channels (already fully normalized).
    return out.reshape(B, K * D)


def netvlad_reference(feat_nchw, conv_w, centroids):
    """Pure-JAX f32 reference of the same forward pass."""
    B, C, H, W = feat_nchw.shape
    K, D = centroids.shape
    x = feat_nchw.reshape(B, C, H * W).astype(jnp.float32)            # (B, D, N)
    x = x / jnp.maximum(jnp.linalg.norm(x, axis=1, keepdims=True), 1e-12)
    s = jnp.einsum('kd,bdn->bkn', conv_w.astype(jnp.float32), x)
    a = jax.nn.softmax(s, axis=1)                                     # (B, K, N)
    vlad = (jnp.einsum('bkn,bdn->bkd', a, x)
            - jnp.sum(a, axis=2)[..., None] * centroids[None].astype(jnp.float32))
    vlad = vlad / jnp.maximum(jnp.linalg.norm(vlad, axis=2, keepdims=True), 1e-12)
    vlad = vlad.reshape(B, K * D)
    vlad = vlad / jnp.maximum(jnp.linalg.norm(vlad, axis=1, keepdims=True), 1e-12)
    return vlad


if __name__ == "__main__":
    # Small config: num_clusters=8, encoder_dim=128, 8x8 feature map, batch=2.
    B, D, K, H, W = 2, 128, 8, 8, 8

    key = jax.random.PRNGKey(0)
    k_feat, k_cent, k_w = jax.random.split(key, 3)

    # Synthetic "backbone output" feature map, emitted in bf16 (the kernel is
    # HBM-bound, so halving the feature-map read is the dominant win).
    feat = jax.random.normal(k_feat, (B, D, H, W), dtype=jnp.bfloat16)

    # nn.Parameter(torch.rand(K, D)) -> uniform [0, 1)
    centroids = jax.random.uniform(k_cent, (K, D), dtype=jnp.float32)

    # nn.Conv2d(D, K, kernel_size=1, bias=False) default init ~ U(-1/sqrt(D), 1/sqrt(D))
    bound = 1.0 / (D ** 0.5)
    conv_w = jax.random.uniform(k_w, (K, D), dtype=jnp.float32,
                                minval=-bound, maxval=bound)

    out = jax.block_until_ready(netvlad_forward(feat, conv_w, centroids))

    assert out.shape == (B, K * D)
    assert bool(jnp.all(jnp.isfinite(out)))

    # Final descriptor is L2-normalized per batch element.
    norms = jnp.sqrt(jnp.sum(out * out, axis=-1))
    assert bool(jnp.all(jnp.abs(norms - 1.0) < 1e-4))

    # Agreement with the pure-JAX f32 reference (loose: kernel uses bf16 MXU
    # operands with f32 accumulation and an approx softmax reciprocal).
    ref = netvlad_reference(feat, conv_w, centroids)
    cos = jnp.sum(out * ref, axis=-1)
    assert bool(jnp.all(cos > 0.99))

    print("KERNEL_OK")
</pallas_src>

<mosaic_0001>
module attributes {stable_mosaic.version = 11 : i64} {
  func.func @netvlad_kernel(%arg0: i32, %arg1: i32, %arg2: memref<1x128x128xbf16, #tpu.memory_space<vmem>>, %arg3: memref<8x128xbf16, #tpu.memory_space<vmem>>, %arg4: memref<8x128xf32, #tpu.memory_space<vmem>>, %arg5: memref<1x8x128xf32, #tpu.memory_space<vmem>>, %arg6: memref<8x128xf32, #tpu.memory_space<vmem>>, %arg7: memref<8x1xf32, #tpu.memory_space<vmem>>) attributes {dimension_semantics = [#tpu.dimension_semantics<parallel>, #tpu.dimension_semantics<arbitrary>], iteration_bounds = array<i64: 2, 1>, scalar_prefetch = 0 : i64, scratch_operands = 2 : i64, tpu.core_type = #tpu.core_type<tc>, window_params = [{transform_indices = @transform_0, window_bounds = array<i64: 1, 128, 128>}, {pipeline_mode = #tpu.pipeline_mode<synchronous>, transform_indices = @transform_1, window_bounds = array<i64: 8, 128>}, {pipeline_mode = #tpu.pipeline_mode<synchronous>, transform_indices = @transform_2, window_bounds = array<i64: 8, 128>}, {transform_indices = @transform_3, window_bounds = array<i64: 1, 8, 128>}]} {
    %c0_i32 = arith.constant 0 : i32
    %0 = arith.cmpi eq, %arg1, %c0_i32 : i32
    %1 = arith.extui %0 : i1 to i32
    %c0_i32_0 = arith.constant 0 : i32
    %2 = arith.cmpi ne, %1, %c0_i32_0 : i32
    scf.if %2 {
      %cst_22 = arith.constant 0.000000e+00 : f32
      %51 = vector.broadcast %cst_22 : f32 to vector<8x128xf32>
      %c0_23 = arith.constant 0 : index
      %c0_24 = arith.constant 0 : index
      %52 = vector.load %arg6[%c0_23, %c0_24] : memref<8x128xf32, #tpu.memory_space<vmem>>, vector<8x128xf32>
      tpu.vector_store %arg6[%c0_23, %c0_24], %51 {strides = array<i32>} : memref<8x128xf32, #tpu.memory_space<vmem>>, vector<8x128xf32>,
      %cst_25 = arith.constant 0.000000e+00 : f32
      %53 = vector.broadcast %cst_25 : f32 to vector<8x1xf32>
      %c0_26 = arith.constant 0 : index
      %c0_27 = arith.constant 0 : index
      %54 = vector.load %arg7[%c0_26, %c0_27] : memref<8x1xf32, #tpu.memory_space<vmem>>, vector<8x1xf32>
      tpu.vector_store %arg7[%c0_26, %c0_27], %53 {strides = array<i32>} : memref<8x1xf32, #tpu.memory_space<vmem>>, vector<8x1xf32>,
    } else {
    }
    %c0 = arith.constant 0 : index
    %c0_1 = arith.constant 0 : index
    %c0_2 = arith.constant 0 : index
    %3 = vector.load %arg2[%c0, %c0_1, %c0_2] : memref<1x128x128xbf16, #tpu.memory_space<vmem>>, vector<1x128x128xbf16>
    %4 = vector.shape_cast %3 : vector<1x128x128xbf16> to vector<128x128xbf16>
    %5 = arith.extf %4 : vector<128x128xbf16> to vector<128x128xf32>
    %6 = arith.mulf %5, %5 : vector<128x128xf32>
    %cst = arith.constant dense<0.000000e+00> : vector<128xf32>
    %7 = vector.multi_reduction <add>, %6, %cst [0] : vector<128x128xf32> to vector<128xf32>
    %8 = vector.shape_cast %7 : vector<128xf32> to vector<1x128xf32>
    %cst_3 = arith.constant 1.000000e-24 : f32
    %9 = vector.broadcast %cst_3 : f32 to vector<1x128xf32>
    %10 = arith.maximumf %8, %9 : vector<1x128xf32>
    %11 = math.rsqrt %10 : vector<1x128xf32>
    %c0_4 = arith.constant 0 : index
    %c0_5 = arith.constant 0 : index
    %12 = vector.load %arg3[%c0_4, %c0_5] : memref<8x128xbf16, #tpu.memory_space<vmem>>, vector<8x128xbf16>
    %cst_6 = arith.constant dense<0.000000e+00> : vector<8x128xf32>
    %13 = tpu.matmul %12, %4, %cst_6 {dimension_numbers = #tpu.dot_dimension_numbers<[1], [0], [0], [1], [0, 0, 1, 1], [], []>} : vector<8x128xbf16>, vector<128x128xbf16>, vector<8x128xf32> -> vector<8x128xf32>
    %14 = vector.broadcast %11 : vector<1x128xf32> to vector<8x128xf32>
    %15 = arith.mulf %13, %14 : vector<8x128xf32>
    %cst_7 = arith.constant dense<0xFF800000> : vector<128xf32>
    %16 = vector.multi_reduction <maximumf>, %15, %cst_7 [0] : vector<8x128xf32> to vector<128xf32>
    %17 = vector.shape_cast %16 : vector<128xf32> to vector<1x128xf32>
    %18 = vector.broadcast %17 : vector<1x128xf32> to vector<8x128xf32>
    %19 = arith.subf %15, %18 : vector<8x128xf32>
    %20 = math.exp %19 : vector<8x128xf32>
    %cst_8 = arith.constant dense<0.000000e+00> : vector<128xf32>
    %21 = vector.multi_reduction <add>, %20, %cst_8 [0] : vector<8x128xf32> to vector<128xf32>
    %22 = vector.shape_cast %21 : vector<128xf32> to vector<1x128xf32>
    %23 = tpu.reciprocal %22 {approx = true} : vector<1x128xf32> -> vector<1x128xf32>
    %24 = vector.broadcast %23 : vector<1x128xf32> to vector<8x128xf32>
    %25 = arith.mulf %20, %24 : vector<8x128xf32>
    %c128_i32 = arith.constant 128 : i32
    %26 = arith.muli %arg1, %c128_i32 : i32
    %27 = tpu.iota {dimensions = array<i32: 1>} : vector<1x128xi32>
    %28 = vector.broadcast %26 : i32 to vector<1x128xi32>
    %29 = arith.addi %28, %27 : vector<1x128xi32>
    %c64_i32 = arith.constant 64 : i32
    %30 = vector.broadcast %c64_i32 : i32 to vector<1x128xi32>
    %31 = arith.cmpi slt, %29, %30 : vector<1x128xi32>
    %cst_9 = arith.constant 0.000000e+00 : f32
    %32 = vector.shape_cast %31 : vector<1x128xi1> to vector<1x128xi1>
    %33 = vector.broadcast %32 : vector<1x128xi1> to vector<8x128xi1>
    %34 = vector.broadcast %cst_9 : f32 to vector<8x128xf32>
    %35 = arith.select %33, %25, %34 : vector<8x128xi1>, vector<8x128xf32>
    %36 = vector.broadcast %11 : vector<1x128xf32> to vector<8x128xf32>
    %37 = arith.mulf %35, %36 : vector<8x128xf32>
    %38 = arith.truncf %37 : vector<8x128xf32> to vector<8x128xbf16>
    %c0_10 = arith.constant 0 : index
    %c0_11 = arith.constant 0 : index
    %39 = vector.load %arg6[%c0_10, %c0_11] : memref<8x128xf32, #tpu.memory_space<vmem>>, vector<8x128xf32>
    %cst_12 = arith.constant dense<0.000000e+00> : vector<8x128xf32>
    %40 = tpu.matmul %38, %4, %cst_12 {dimension_numbers = #tpu.dot_dimension_numbers<[1], [1], [0], [0], [0, 0, 1, 0], [], []>} : vector<8x128xbf16>, vector<128x128xbf16>, vector<8x128xf32> -> vector<8x128xf32>
    %41 = arith.addf %39, %40 : vector<8x128xf32>
    %c0_13 = arith.constant 0 : index
    %c0_14 = arith.constant 0 : index
    %42 = vector.load %arg6[%c0_13, %c0_14] : memref<8x128xf32, #tpu.memory_space<vmem>>, vector<8x128xf32>
    tpu.vector_store %arg6[%c0_13, %c0_14], %41 {strides = array<i32>} : memref<8x128xf32, #tpu.memory_space<vmem>>, vector<8x128xf32>,
    %c0_15 = arith.constant 0 : index
    %c0_16 = arith.constant 0 : index
    %43 = vector.load %arg7[%c0_15, %c0_16] : memref<8x1xf32, #tpu.memory_space<vmem>>, vector<8x1xf32>
    %cst_17 = arith.constant dense<0.000000e+00> : vector<8xf32>
    %44 = vector.multi_reduction <add>, %35, %cst_17 [1] : vector<8x128xf32> to vector<8xf32>
    %45 = vector.shape_cast %44 : vector<8xf32> to vector<8x1xf32>
    %46 = arith.addf %43, %45 : vector<8x1xf32>
    %c0_18 = arith.constant 0 : index
    %c0_19 = arith.constant 0 : index
    %47 = vector.load %arg7[%c0_18, %c0_19] : memref<8x1xf32, #tpu.memory_space<vmem>>, vector<8x1xf32>
    tpu.vector_store %arg7[%c0_18, %c0_19], %46 {strides = array<i32>} : memref<8x1xf32, #tpu.memory_space<vmem>>, vector<8x1xf32>,
    %c0_i32_20 = arith.constant 0 : i32
    %48 = arith.cmpi eq, %arg1, %c0_i32_20 : i32
    %49 = arith.extui %48 : i1 to i32
    %c0_i32_21 = arith.constant 0 : i32
    %50 = arith.cmpi ne, %49, %c0_i32_21 : i32
    scf.if %50 {
      %c0_22 = arith.constant 0 : index
      %c0_23 = arith.constant 0 : index
      %51 = vector.load %arg6[%c0_22, %c0_23] : memref<8x128xf32, #tpu.memory_space<vmem>>, vector<8x128xf32>
      %c0_24 = arith.constant 0 : index
      %c0_25 = arith.constant 0 : index
      %52 = vector.load %arg7[%c0_24, %c0_25] : memref<8x1xf32, #tpu.memory_space<vmem>>, vector<8x1xf32>
      %c0_26 = arith.constant 0 : index
      %c0_27 = arith.constant 0 : index
      %53 = vector.load %arg4[%c0_26, %c0_27] : memref<8x128xf32, #tpu.memory_space<vmem>>, vector<8x128xf32>
      %54 = vector.broadcast %52 : vector<8x1xf32> to vector<8x128xf32>
      %55 = arith.mulf %54, %53 : vector<8x128xf32>
      %56 = arith.subf %51, %55 : vector<8x128xf32>
      %57 = arith.mulf %56, %56 : vector<8x128xf32>
      %cst_28 = arith.constant dense<0.000000e+00> : vector<8xf32>
      %58 = vector.multi_reduction <add>, %57, %cst_28 [1] : vector<8x128xf32> to vector<8xf32>
      %59 = vector.shape_cast %58 : vector<8xf32> to vector<8x1xf32>
      %cst_29 = arith.constant 1.000000e-24 : f32
      %60 = vector.broadcast %cst_29 : f32 to vector<8x1xf32>
      %61 = arith.maximumf %59, %60 : vector<8x1xf32>
      %62 = math.rsqrt %61 : vector<8x1xf32>
      %63 = vector.broadcast %62 : vector<8x1xf32> to vector<8x128xf32>
      %64 = arith.mulf %56, %63 : vector<8x128xf32>
      %65 = arith.mulf %64, %64 : vector<8x128xf32>
      %66 = vector.shape_cast %65 : vector<8x128xf32> to vector<1x8x128xf32>
      %cst_30 = arith.constant dense<0.000000e+00> : vector<1xf32>
      %67 = vector.multi_reduction <add>, %66, %cst_30 [1, 2] : vector<1x8x128xf32> to vector<1xf32>
      %68 = vector.shape_cast %67 : vector<1xf32> to vector<1x1x1xf32>
      %69 = vector.extract %68[0, 0, 0] : f32 from vector<1x1x1xf32>
      %cst_31 = arith.constant 1.000000e-24 : f32
      %70 = arith.maximumf %69, %cst_31 : f32
      %71 = math.rsqrt %70 : f32
      %72 = vector.broadcast %71 : f32 to vector<8x128xf32>
      %73 = arith.mulf %64, %72 : vector<8x128xf32>
      %c0_32 = arith.constant 0 : index
      %c0_33 = arith.constant 0 : index
      %c0_34 = arith.constant 0 : index
      %74 = vector.load %arg5[%c0_32, %c0_33, %c0_34] : memref<1x8x128xf32, #tpu.memory_space<vmem>>, vector<1x8x128xf32>
      %75 = vector.shape_cast %74 : vector<1x8x128xf32> to vector<8x128xf32>
      %76 = vector.shape_cast %73 : vector<8x128xf32> to vector<1x8x128xf32>
      tpu.vector_store %arg5[%c0_32, %c0_33, %c0_34], %76 {strides = array<i32>} : memref<1x8x128xf32, #tpu.memory_space<vmem>>, vector<1x8x128xf32>,
    } else {
    }
    return
  }
  func.func @transform_0(%arg0: i32, %arg1: i32) -> (i32, i32, i32) {
    %c0_i32 = arith.constant 0 : i32
    %c0_i32_0 = arith.constant 0 : i32
    return %arg0, %c0_i32, %arg1 : i32, i32, i32
  }
  func.func @transform_1(%arg0: i32, %arg1: i32) -> (i32, i32) {
    %c0_i32 = arith.constant 0 : i32
    %c0_i32_0 = arith.constant 0 : i32
    %c0_i32_1 = arith.constant 0 : i32
    return %c0_i32, %c0_i32_0 : i32, i32
  }
  func.func @transform_2(%arg0: i32, %arg1: i32) -> (i32, i32) {
    %c0_i32 = arith.constant 0 : i32
    %c0_i32_0 = arith.constant 0 : i32
    %c0_i32_1 = arith.constant 0 : i32
    return %c0_i32, %c0_i32_0 : i32, i32
  }
  func.func @transform_3(%arg0: i32, %arg1: i32) -> (i32, i32, i32) {
    %c0_i32 = arith.constant 0 : i32
    %c0_i32_0 = arith.constant 0 : i32
    %c0_i32_1 = arith.constant 0 : i32
    return %arg0, %c0_i32, %c0_i32_0 : i32, i32, i32
  }
}

</mosaic_0001>

<llo_original>
// kernel: tpu_custom_call.1
$region0: #{tpu_custom_call.1}
  #allocation0 [shape = 'u32[]', space=smem, size = 0x4, offset = 0x4, fixed_abs, tag = 'smem constant byte address 0x4 - core index']
  #allocation1 [shape = 'u32[144,128]{1,0:T(1,128)}', space=vmem, size = 0x12000, scoped, tag = 'internal scratch']
  #allocation2 [shape = 'f32[8,128]{1,0:T(8,128)}', space=vmem, size = 0x1000, scoped, tag = 'scratch operand']
  #allocation3 [shape = 'f32[8,1]{1,0:T(8,128)}', space=vmem, size = 0x1000, scoped, tag = 'scratch operand']
  %s0 = inlined_call_operand.hbm [shape: bf16[2,128,128], index: 0, kind: input, shape index: {}]
  %s1 = inlined_call_operand.hbm [shape: bf16[8,128], index: 1, kind: input, shape index: {}]
  %s2 = inlined_call_operand.hbm [shape: f32[8,128], index: 2, kind: input, shape index: {}]
  %s3 = inlined_call_operand.hbm [shape: f32[2,8,128], index: 3, kind: output, shape index: {}]
  %s4 = sld [smem:[#allocation0]]
  $region65: #{tpu_custom_call.1} parent=0
    _
  %s6 = ssub.s32 1, %s4
  %s7 = scalar_select 0, %s6, %s4
  $region1: #{tpu_custom_call.1} parent=0
    #allocation4 [shape = 'u8[65536]{0}', space=vmem, size = 0x10000, scoped, tag = 'input window, operand 0']
    #allocation5 [shape = 's32[2]{0}', space=sflag, size = 0x8, scoped, tag = 'scoped memory for tpu_custom_call.1']
    #allocation6 [shape = 's32[2]{0}', space=sflag, size = 0x8, scoped, tag = 'scoped memory for tpu_custom_call.1']
    #allocation7 [shape = 'u8[2048]{0}', space=vmem, size = 0x800, scoped, tag = 'input window, operand 1, single buffered']
    #allocation8 [shape = 's32[1]{0}', space=sflag, size = 0x4, scoped, tag = 'scoped memory for tpu_custom_call.1']
    #allocation9 [shape = 'u8[4096]{0}', space=vmem, size = 0x1000, scoped, tag = 'input window, operand 2, single buffered']
    #allocation10 [shape = 'u8[8192]{0}', space=vmem, size = 0x2000, scoped, tag = 'output window, operand 0']
    %8 = vsyncpa [#allocation5], 0
    %s9 = scalar_lea.sflag [#allocation5], 1
    %10 = vsyncpa %s9, 0
    %11 = vsyncpa [#allocation8], 0
    %12 = vsyncpa [#allocation6], 0
    %s13 = scalar_lea.sflag [#allocation6], 1
    %14 = vsyncpa %s13, 0
    loop: start=0, step=1, limit=4
    $region2: #{tpu_custom_call.1} parent=1 // loop_pre_header
      _
    $region3: #{tpu_custom_call.1} parent=1 // loop_header
      %s16 = sphi 0, %s20
      %p17 = scmp.ge.s32.totalorder %s16, 4
      %s23 = sphi 0, %s35
      %s24 = sphi 0, %s31
      %s25 = sphi 0, %s23
      %s26 = sphi 0, %s24
      %s27 = sphi 0, %s25
      %s28 = sphi 0, %s26
      %s40 = sphi 0, %s42
      %s43 = sphi 0, %s40
      %s44 = sphi 0, %s43
      %s60 = sphi 0, %s44
      %s64 = sphi 0, %s64
      %s66 = sphi 0, %s64
      %s67 = sphi 0, %s66
      %s81 = sphi 0, %s67
      %s85 = sphi 0, %s85
      %s87 = sphi 0, %s85
      %s88 = sphi 0, %s87
      %s102 = sphi 0, %s88
      %s108 = sphi 0, %s110
      %s111 = sphi 0, %s108
      %s112 = sphi 0, %s111
      %s128 = sphi 0, %s112
    $region4: #{tpu_custom_call.1} parent=1 // loop_header_branch
      %19 = sbr.rel (%p17) target = $region8
    $region5: #{tpu_custom_call.1} parent=1 // loop_body
      %s21 = ssub.s32 %s16, 1
      %s22 = ssub.s32 %s16, 2
      %s29 = sadd.s32 1, %s24
      %p30 = scmp.ge.s32.totalorder %s29, 1
      %s31 = scalar_select %p30, 0, %s29
      %s32 = sadd.s32 1, %s23
      %s33 = scalar_select %p30, %s32, %s23
      %p34 = scmp.ge.s32.totalorder %s33, 2
      %s35 = scalar_select %p34, 0, %s33
      %s36 = ssub.s32 %s23, %s35
      %s37 = ssub.s32 %s24, %s31
      %s38 = sor.u32 %s36, %s37
      %p39 = scmp.eq.s32.totalorder %s38, 0
      %s41 = sadd.s32 %s40, 1
      %s42 = scalar_select %p39, %s40, %s41
      %p45 = pneg %p39
      %p46 = scmp.eq.s32.totalorder %s16, 1
      %p47 = por %p45, %p46
      %p48 = scmp.ne.s32.totalorder %s40, %s43
      %p49 = scmp.eq.s32.totalorder %s16, 0
      %p50 = por %p48, %p49
      %p51 = scmp.ne.s32.totalorder %s40, %s43
      %p52 = scmp.eq.s32.totalorder %s21, 1
      %p53 = por %p51, %p52
      %p54 = scmp.ne.s32.totalorder %s43, %s44
      %p55 = scmp.eq.s32.totalorder %s21, 0
      %p56 = por %p54, %p55
      %p57 = scmp.ne.s32.totalorder %s43, %s44
      %p58 = scmp.eq.s32.totalorder %s22, 1
      %p59 = por %p57, %p58
      %p61 = scmp.ne.s32.totalorder %s44, %s60
      %p62 = scmp.eq.s32.totalorder %s22, 0
      %p63 = por %p61, %p62
      %s65 = sadd.s32 %s64, 1
      %p68 = scmp.eq.s32.totalorder %s16, 1
      %p69 = scmp.ne.s32.totalorder %s64, %s66
      %p70 = scmp.eq.s32.totalorder %s16, 0
      %p71 = por %p69, %p70
      %p72 = scmp.ne.s32.totalorder %s64, %s66
      %p73 = scmp.eq.s32.totalorder %s21, 1
      %p74 = por %p72, %p73
      %p75 = scmp.ne.s32.totalorder %s66, %s67
      %p76 = scmp.eq.s32.totalorder %s21, 0
      %p77 = por %p75, %p76
      %p78 = scmp.ne.s32.totalorder %s66, %s67
      %p79 = scmp.eq.s32.totalorder %s22, 1
      %p80 = por %p78, %p79
      %p82 = scmp.ne.s32.totalorder %s67, %s81
      %p83 = scmp.eq.s32.totalorder %s22, 0
      %p84 = por %p82, %p83
      %s86 = sadd.s32 %s85, 1
      %p89 = scmp.eq.s32.totalorder %s16, 1
      %p90 = scmp.ne.s32.totalorder %s85, %s87
      %p91 = scmp.eq.s32.totalorder %s16, 0
      %p92 = por %p90, %p91
      %p93 = scmp.ne.s32.totalorder %s85, %s87
      %p94 = scmp.eq.s32.totalorder %s21, 1
      %p95 = por %p93, %p94
      %p96 = scmp.ne.s32.totalorder %s87, %s88
      %p97 = scmp.eq.s32.totalorder %s21, 0
      %p98 = por %p96, %p97
      %p99 = scmp.ne.s32.totalorder %s87, %s88
      %p100 = scmp.eq.s32.totalorder %s22, 1
      %p101 = por %p99, %p100
      %p103 = scmp.ne.s32.totalorder %s88, %s102
      %p104 = scmp.eq.s32.totalorder %s22, 0
      %p105 = por %p103, %p104
      %s106 = ssub.s32 %s23, %s35
      %p107 = scmp.eq.s32.totalorder %s106, 0
      %s109 = sadd.s32 %s108, 1
      %s110 = scalar_select %p107, %s108, %s109
      %p113 = pneg %p107
      %p114 = scmp.eq.s32.totalorder %s16, 1
      %p115 = por %p113, %p114
      %p116 = scmp.ne.s32.totalorder %s108, %s111
      %p117 = scmp.eq.s32.totalorder %s16, 0
      %p118 = por %p116, %p117
      %p119 = scmp.ne.s32.totalorder %s108, %s111
      %p120 = scmp.eq.s32.totalorder %s21, 1
      %p121 = por %p119, %p120
      %p122 = scmp.ne.s32.totalorder %s111, %s112
      %p123 = scmp.eq.s32.totalorder %s21, 0
      %p124 = por %p122, %p123
      %p125 = scmp.ne.s32.totalorder %s111, %s112
      %p126 = scmp.eq.s32.totalorder %s22, 1
      %p127 = por %p125, %p126
      %p129 = scmp.ne.s32.totalorder %s112, %s128
      %p130 = scmp.eq.s32.totalorder %s22, 0
      %p131 = por %p129, %p130
      %p132 = scmp.le.s32.totalorder 1, %s16
      %p133 = scmp.lt.s32.totalorder %s16, 3
      %p134 = pnand %p132, %p133
      %p135 = pneg %p134
      // Predicated region
      $region9: #{tpu_custom_call.1} parent=5 // pred_check
        _
      $region10: #{tpu_custom_call.1} parent=5 // pred_check_branch
        %137 = sbr.rel (%p134) target = $region12
      $region11: #{tpu_custom_call.1} parent=5 // pred_region
        %s138 = ssub.s32 %s16, 1
        // Predicated region
        $region13: #{tpu_custom_call.1} parent=11 // pred_check
          %p139 = pneg %p77
        $region14: #{tpu_custom_call.1} parent=11 // pred_check_branch
          %141 = sbr.rel (%p139) target = $region16
        $region15: #{tpu_custom_call.1} parent=11 // pred_region
          %s143 = ssub.s32 64, 64
          %144 = vsyncadd [#allocation8], %s143
          %s146 = sshll.u32 [#allocation7], 4
          %s147 = int_to_ptr.vmem [resolvable:$true] %s146
          %149 = dma.hbm_to_vmem [thread:$0]  %s1, 64, %s147, [#allocation8]
        $region16: #{tpu_custom_call.1} parent=11 // pred_fallthru
          _
        // Predicated region
        $region17: #{tpu_custom_call.1} parent=11 // pred_check
          %p150 = pneg %p98
        $region18: #{tpu_custom_call.1} parent=11 // pred_check_branch
          %152 = sbr.rel (%p150) target = $region20
        $region19: #{tpu_custom_call.1} parent=11 // pred_region
          %s154 = ssub.s32 128, 128
          %155 = vsyncadd [#allocation8], %s154
          %s157 = sshll.u32 [#allocation9], 4
          %s158 = int_to_ptr.vmem [resolvable:$true] %s157
          %160 = dma.hbm_to_vmem [thread:$0]  %s2, 128, %s158, [#allocation8]
        $region20: #{tpu_custom_call.1} parent=11 // pred_fallthru
          _
      $region12: #{tpu_custom_call.1} parent=5 // pred_fallthru
        _
      %p161 = scmp.lt.s32.totalorder %s16, 2
      // Predicated region
      $region21: #{tpu_custom_call.1} parent=5 // pred_check
        %p162 = pneg %p161
      $region22: #{tpu_custom_call.1} parent=5 // pred_check_branch
        %164 = sbr.rel (%p162) target = $region24
      $region23: #{tpu_custom_call.1} parent=5 // pred_region
        // Predicated region
        $region25: #{tpu_custom_call.1} parent=23 // pred_check
          %p165 = pneg %p50
        $region26: #{tpu_custom_call.1} parent=23 // pred_check_branch
          %167 = sbr.rel (%p165) target = $region28
        $region27: #{tpu_custom_call.1} parent=23 // pred_region
          %s168 = sand.u32 %s40, 1
          %s169 = scalar_lea.sflag [#allocation5], %s168
          %s170 = sand.u32 %s40, 1
          %s171 = smul.addr %s170, 64
          %s172 = scalar_lea.vmem [#allocation4], %s171
          %s174 = ssub.s32 1024, 1024
          %175 = vsyncadd %s169, %s174
          %s176 = smul.addr %s23, 16
          %s177 = sadd.s32 %s24, %s176
          %s178 = smul.addr %s177, 64
          %s179 = scalar_lea.hbm %s0, %s178
          %s180 = sshll.u32 %s172, 4
          %s181 = int_to_ptr.vmem [resolvable:$true] %s180
          %186 = dma.hbm_to_vmem [thread:$0]  %s179, 1024, %s181, %s169, 64, 64, 4
        $region28: #{tpu_custom_call.1} parent=23 // pred_fallthru
          _
      $region24: #{tpu_custom_call.1} parent=5 // pred_fallthru
        _
      %p187 = scmp.le.s32.totalorder 1, %s16
      %p188 = scmp.lt.s32.totalorder %s16, 3
      %p189 = pnand %p187, %p188
      %p190 = pneg %p189
      // Predicated region
      $region29: #{tpu_custom_call.1} parent=5 // pred_check
        _
      $region30: #{tpu_custom_call.1} parent=5 // pred_check_branch
        %192 = sbr.rel (%p189) target = $region32
      $region31: #{tpu_custom_call.1} parent=5 // pred_region
        %s193 = ssub.s32 %s16, 1
        %s194 = sand.u32 %s43, 1
        %s195 = scalar_lea.sflag [#allocation5], %s194
        %s196 = sand.u32 %s43, 1
        %s197 = smul.addr %s196, 64
        %s198 = scalar_lea.vmem [#allocation4], %s197
        // Predicated region
        $region33: #{tpu_custom_call.1} parent=31 // pred_check
          %p199 = pneg %p56
        $region34: #{tpu_custom_call.1} parent=31 // pred_check_branch
          %201 = sbr.rel (%p199) target = $region36
        $region35: #{tpu_custom_call.1} parent=31 // pred_region
          %202 = dma.done %s195, 1024
        $region36: #{tpu_custom_call.1} parent=31 // pred_fallthru
          _
        // Predicated region
        $region37: #{tpu_custom_call.1} parent=31 // pred_check
          %p203 = pneg %p77
        $region38: #{tpu_custom_call.1} parent=31 // pred_check_branch
          %205 = sbr.rel (%p203) target = $region40
        $region39: #{tpu_custom_call.1} parent=31 // pred_region
          %206 = dma.done [#allocation8], 64
        $region40: #{tpu_custom_call.1} parent=31 // pred_fallthru
          _
        // Predicated region
        $region41: #{tpu_custom_call.1} parent=31 // pred_check
          %p207 = pneg %p98
        $region42: #{tpu_custom_call.1} parent=31 // pred_check_branch
          %209 = sbr.rel (%p207) target = $region44
        $region43: #{tpu_custom_call.1} parent=31 // pred_region
          %210 = dma.done [#allocation8], 128
        $region44: #{tpu_custom_call.1} parent=31 // pred_fallthru
          _
        %s211 = sand.u32 %s43, 1
        %s212 = scalar_lea.sflag [#allocation5], %s211
        %s213 = sand.u32 %s43, 1
        %s214 = smul.addr %s213, 64
        %s215 = scalar_lea.vmem [#allocation4], %s214
        %p216 = pneg %p56
        %p217 = pneg %p53
        %p218 = pneg %p77
        %p219 = pneg %p74
        %p220 = pneg %p98
        %p221 = pneg %p95
        %p222 = pneg %p124
        %p223 = pneg %p121
        %s224 = sand.u32 %s111, 1
        %s225 = scalar_lea.sflag [#allocation6], %s224
        %s226 = sand.u32 %s111, 1
        %s227 = smul.addr %s226, 8
        %s228 = scalar_lea.vmem [#allocation10], %s227
        %p230 = scmp.eq.s32.totalorder %s26, 0
        // Predicated region
        $region45: #{tpu_custom_call.1} parent=31 // pred_check
          %p231 = pneg %p230
        $region46: #{tpu_custom_call.1} parent=31 // pred_check_branch
          %233 = sbr.rel (%p231) target = $region48
        $region47: #{tpu_custom_call.1} parent=31 // pred_region
          %234 = vst [vmem:[#allocation2] sm:$0xff] 0.0
          %vm235 = vcmask 7168
          %236 = vst.msk [vmem:[#allocation3] sm:$0xff] %vm235, 0.0
        $region48: #{tpu_custom_call.1} parent=31 // pred_fallthru
          _
        %v237 = vld [vmem:[%s198] sm:$0xf]
        %v238 = vld [vmem:[%s198 + $0x4] sm:$0xf]
        %v239 = vld [vmem:[%s198 + $0x8] sm:$0xf]
        %v240 = vld [vmem:[%s198 + $0xc] sm:$0xf]
        %v241 = vld [vmem:[%s198 + $0x10] sm:$0xf]
        %v242 = vld [vmem:[%s198 + $0x14] sm:$0xf]
        %v243 = vld [vmem:[%s198 + $0x18] sm:$0xf]
        %v244 = vld [vmem:[%s198 + $0x1c] sm:$0xf]
        %v245 = vld [vmem:[%s198 + $0x20] sm:$0xf]
        %v246 = vld [vmem:[%s198 + $0x24] sm:$0xf]
        %v247 = vld [vmem:[%s198 + $0x28] sm:$0xf]
        %v248 = vld [vmem:[%s198 + $0x2c] sm:$0xf]
        %v249 = vld [vmem:[%s198 + $0x30] sm:$0xf]
        %v250 = vld [vmem:[%s198 + $0x34] sm:$0xf]
        %v251 = vld [vmem:[%s198 + $0x38] sm:$0xf]
        %v252 = vld [vmem:[%s198 + $0x3c] sm:$0xf]
        %v253 = vunpack.c.l.bf16 %v237
        %v254 = vunpack.c.l.bf16 %v238
        %v255 = vunpack.c.l.bf16 %v239
        %v256 = vunpack.c.l.bf16 %v240
        %v257 = vunpack.c.l.bf16 %v241
        %v258 = vunpack.c.l.bf16 %v242
        %v259 = vunpack.c.l.bf16 %v243
        %v260 = vunpack.c.l.bf16 %v244
        %v261 = vunpack.c.l.bf16 %v245
        %v262 = vunpack.c.l.bf16 %v246
        %v263 = vunpack.c.l.bf16 %v247
        %v264 = vunpack.c.l.bf16 %v248
        %v265 = vunpack.c.l.bf16 %v249
        %v266 = vunpack.c.l.bf16 %v250
        %v267 = vunpack.c.l.bf16 %v251
        %v268 = vunpack.c.l.bf16 %v252
        %v269 = vmul.f32 %v253, %v253
        %v270 = vmul.f32 %v254, %v254
        %v271 = vmul.f32 %v255, %v255
        %v272 = vmul.f32 %v256, %v256
        %v273 = vmul.f32 %v257, %v257
        %v274 = vmul.f32 %v258, %v258
        %v275 = vmul.f32 %v259, %v259
        %v276 = vmul.f32 %v260, %v260
        %v277 = vmul.f32 %v261, %v261
        %v278 = vmul.f32 %v262, %v262
        %v279 = vmul.f32 %v263, %v263
        %v280 = vmul.f32 %v264, %v264
        %v281 = vmul.f32 %v265, %v265
        %v282 = vmul.f32 %v266, %v266
        %v283 = vmul.f32 %v267, %v267
        %v284 = vmul.f32 %v268, %v268
        %v285 = vadd.f32 %v269, %v270
        %v286 = vadd.f32 %v285, %v271
        %v287 = vadd.f32 %v286, %v272
        %v288 = vadd.f32 %v287, %v273
        %v289 = vadd.f32 %v288, %v274
        %v290 = vadd.f32 %v289, %v275
        %v291 = vadd.f32 %v290, %v276
        %v292 = vadd.f32 %v291, %v277
        %v293 = vadd.f32 %v292, %v278
        %v294 = vadd.f32 %v293, %v279
        %v295 = vadd.f32 %v294, %v280
        %v296 = vadd.f32 %v295, %v281
        %v297 = vadd.f32 %v296, %v282
        %v298 = vadd.f32 %v297, %v283
        %v299 = vadd.f32 %v298, %v284
        %v300 = vrot.slane %v299, 4
        %v301 = vadd.f32 %v299, %v300
        %v302 = vrot.slane %v301, 2
        %v303 = vadd.f32 %v301, %v302
        %v304 = vrot.slane %v303, 1
        %v305 = vadd.f32 %v303, %v304
        %v306 = vmax.f32 %v305, 1e-24
        %v307 = vrsqrt.pop %v306
        %v308 = vld [vmem:[#allocation7] sm:$0xf]
        %v325 = vunpack.c.l.b16 %v237
        %v326 = vunpack.c.l.b16 %v238
        %v327 = vunpack.c.l.b16 %v239
        %v328 = vunpack.c.l.b16 %v240
        %v329 = vunpack.c.l.b16 %v241
        %v330 = vunpack.c.l.b16 %v242
        %v331 = vunpack.c.l.b16 %v243
        %v332 = vunpack.c.l.b16 %v244
        %v333 = vunpack.c.l.b16 %v245
        %v334 = vunpack.c.l.b16 %v246
        %v335 = vunpack.c.l.b16 %v247
        %v336 = vunpack.c.l.b16 %v248
        %v337 = vunpack.c.l.b16 %v249
        %v338 = vunpack.c.l.b16 %v250
        %v339 = vunpack.c.l.b16 %v251
        %v340 = vunpack.c.l.b16 %v252
        %v341 = vpack.c.b16 %v326, %v325
        %v342 = vpack.c.b16 %v328, %v327
        %v343 = vpack.c.b16 %v330, %v329
        %v344 = vpack.c.b16 %v332, %v331
        %v345 = vpack.c.b16 %v334, %v333
        %v346 = vpack.c.b16 %v336, %v335
        %v347 = vpack.c.b16 %v338, %v337
        %v348 = vpack.c.b16 %v340, %v339
        %357 = vmatprep.subr.bf16.mxu0 0
        %358 = vmatpush1.bf16.msra.mxu0 %v341
        %359 = vmatprep.subr.bf16.mxu0 0
        %360 = vmatpush1.bf16.msra.mxu0 %v342
        %361 = vmatprep.subr.bf16.mxu0 0
        %362 = vmatpush1.bf16.msra.mxu0 %v343
        %363 = vmatprep.subr.bf16.mxu0 0
        %364 = vmatpush1.bf16.msra.mxu0 %v344
        %365 = vmatprep.subr.bf16.mxu0 0
        %366 = vmatpush1.bf16.msra.mxu0 %v345
        %367 = vmatprep.subr.bf16.mxu0 0
        %368 = vmatpush1.bf16.msra.mxu0 %v346
        %369 = vmatprep.subr.bf16.mxu0 0
        %370 = vmatpush1.bf16.msra.mxu0 %v347
        %371 = vmatprep.subr.bf16.mxu0 0
        %372 = vmatpush1.bf16.msra.mxu0 %v348
        %373 = vmatprep.subr.bf16.mxu0 0
        %374 = vmatpush1.bf16.msra.mxu0 0
        %375 = vmatprep.subr.bf16.mxu0 0
        %376 = vmatpush1.bf16.msra.mxu0 0
        %377 = vmatprep.subr.bf16.mxu0 0
        %378 = vmatpush1.bf16.msra.mxu0 0
        %379 = vmatprep.subr.bf16.mxu0 0
        %380 = vmatpush1.bf16.msra.mxu0 0
        %381 = vmatprep.subr.bf16.mxu0 0
        %382 = vmatpush1.bf16.msra.mxu0 0
        %383 = vmatprep.subr.bf16.mxu0 0
        %384 = vmatpush1.bf16.msra.mxu0 0
        %385 = vmatprep.subr.bf16.mxu0 0
        %386 = vmatpush1.bf16.msra.mxu0 0
        %387 = vmatprep.subr.bf16.mxu0 0
        %388 = vmatpush1.bf16.msra.mxu0 0
        %389 = vmatprep.mubr.bf16.mxu0 0
        %390 = vmatmul.mubr.bf16.gmra.mrb[0].mxu0 %v308
        %v391 = vpop.f32.mrb[0].mxu0
        %v392 = vadd.f32 0.0, %v391
        %v393 = vpop.f32.mrb[0].mxu0
        %v394 = vpop.f32.mrb[0].mxu0
        %v395 = vpop.f32.mrb[0].mxu0
        %396 = vdwg.mxu0
        %v397 = vmul.f32 %v392, %v307
        %v398 = vrot.slane %v397, 4
        %v399 = vmax.f32 %v397, %v398
        %v400 = vrot.slane %v399, 2
        %v401 = vmax.f32 %v399, %v400
        %v402 = vrot.slane %v401, 1
        %v403 = vmax.f32 %v401, %v402
        %v404 = vsub.f32 %v397, %v403
        %v405 = vmul.f32 %v404, 1.442695
        %v406 = vpow.pop %v405
        %v407 = vrot.slane %v406, 4
        %v408 = vadd.f32 %v406, %v407
        %v409 = vrot.slane %v408, 2
        %v410 = vadd.f32 %v408, %v409
        %v411 = vrot.slane %v410, 1
        %v412 = vadd.f32 %v410, %v411
        %v413 = vrcp.pop %v412
        %v414 = vmul.f32 %v406, %v413
        %s415 = smul.u32 %s26, 128
        %v416 = vlaneseq
        %v417 = vand.u32 %v416, 127
        %v418 = vstv %s415
        %v419 = vadd.s32 %v418, %v417
        %vm420 = vcmp.lt.s32.totalorder %v419, 64
        %v421 = vsel %vm420, 1, 0
        %vm422 = vcmp.eq.s32.totalorder %v421, 1
        %v423 = vsel %vm422, %v414, 0.0
        %v424 = vmul.f32 %v423, %v307
        %v425 = vpack.c.bf16 %v424, %v424
        %v426 = vld [vmem:[#allocation2] sm:$0xff]
        %427 = vmatprep.subr.bf16.mxu0 0
        %428 = vmatpush1.bf16.xpose.msra.mxu0 %v341
        %429 = vmatprep.subr.bf16.mxu0 0
        %430 = vmatpush1.bf16.xpose.msra.mxu0 %v342
        %431 = vmatprep.subr.bf16.mxu0 0
        %432 = vmatpush1.bf16.xpose.msra.mxu0 %v343
        %433 = vmatprep.subr.bf16.mxu0 0
        %434 = vmatpush1.bf16.xpose.msra.mxu0 %v344
        %435 = vmatprep.subr.bf16.mxu0 0
        %436 = vmatpush1.bf16.xpose.msra.mxu0 %v345
        %437 = vmatprep.subr.bf16.mxu0 0
        %438 = vmatpush1.bf16.xpose.msra.mxu0 %v346
        %439 = vmatprep.subr.bf16.mxu0 0
        %440 = vmatpush1.bf16.xpose.msra.mxu0 %v347
        %441 = vmatprep.subr.bf16.mxu0 0
        %442 = vmatpush1.bf16.xpose.msra.mxu0 %v348
        %443 = vmatprep.subr.bf16.mxu0 0
        %444 = vmatpush1.bf16.xpose.msra.mxu0 0
        %445 = vmatprep.subr.bf16.mxu0 0
        %446 = vmatpush1.bf16.xpose.msra.mxu0 0
        %447 = vmatprep.subr.bf16.mxu0 0
        %448 = vmatpush1.bf16.xpose.msra.mxu0 0
        %449 = vmatprep.subr.bf16.mxu0 0
        %450 = vmatpush1.bf16.xpose.msra.mxu0 0
        %451 = vmatprep.subr.bf16.mxu0 0
        %452 = vmatpush1.bf16.xpose.msra.mxu0 0
        %453 = vmatprep.subr.bf16.mxu0 0
        %454 = vmatpush1.bf16.xpose.msra.mxu0 0
        %455 = vmatprep.subr.bf16.mxu0 0
        %456 = vmatpush1.bf16.xpose.msra.mxu0 0
        %457 = vmatprep.subr.bf16.mxu0 0
        %458 = vmatpush1.bf16.xpose.msra.mxu0 0
        %459 = vmatprep.mubr.bf16.mxu0 0
        %460 = vmatmul.mubr.bf16.gmra.mrb[0].mxu0 %v425
        %v461 = vpop.f32.mrb[0].mxu0
        %v462 = vadd.f32 0.0, %v461
        %v463 = vpop.f32.mrb[0].mxu0
        %v464 = vpop.f32.mrb[0].mxu0
        %v465 = vpop.f32.mrb[0].mxu0
        %466 = vdwg.mxu0
        %v467 = vadd.f32 %v426, %v462
        %468 = vst [vmem:[#allocation2] sm:$0xff] %v467
        %v469 = vld [vmem:[#allocation3] sm:$0xff]
        %470 = vadd.xlane.f32.xlu0 %v423
        %v471 = vpop.xlane.xlu0 %470
        %v472 = vadd.f32 %v469, %v471
        %vm473 = vcmask 7168
        %474 = vst.msk [vmem:[#allocation3] sm:$0xff] %vm473, %v472
        // Predicated region
        $region49: #{tpu_custom_call.1} parent=31 // pred_check
          %p475 = pneg %p230
        $region50: #{tpu_custom_call.1} parent=31 // pred_check_branch
          %477 = sbr.rel (%p475) target = $region52
        $region51: #{tpu_custom_call.1} parent=31 // pred_region
          %v478 = vld [vmem:[#allocation2] sm:$0xff]
          %v479 = vld [vmem:[#allocation3] sm:$0xff]
          %v480 = vld [vmem:[#allocation9] sm:$0xff]
          %482 = vset.pattern.permute.xlu0 0
          %483 = vperm.xlu0 %482, %v479
          %v484 = vpop.permute.xlu0 %483
          %v486 = vmul.f32 %v484, %v480
          %v487 = vsub.f32 %v478, %v486
          %v488 = vmul.f32 %v487, %v487
          %489 = vadd.xlane.f32.xlu0 %v488
          %v490 = vpop.xlane.xlu0 %489
          %v491 = vmax.f32 %v490, 1e-24
          %v492 = vrsqrt.pop %v491
          %v493 = vmul.f32 %v487, %v492
          %v494 = vmul.f32 %v493, %v493
          %495 = vadd.xlane.f32.xlu0 %v494
          %v496 = vpop.xlane.xlu0 %495
          %v497 = vrot.slane %v496, 4
          %v498 = vadd.f32 %v496, %v497
          %v499 = vrot.slane %v498, 2
          %v500 = vadd.f32 %v498, %v499
          %v501 = vrot.slane %v500, 1
          %v502 = vadd.f32 %v500, %v501
          %s503 = vtos %v502
          %s504 = smax.f32 %s503, 1e-24
          %v505 = vstv %s504
          %v506 = vrsqrt.pop %v505
          %s507 = vtos %v506
          %v508 = vstv %s507
          %v509 = vmul.f32 %v493, %v508
          %510 = vst [vmem:[%s228] sm:$0xff] %v509
        $region52: #{tpu_custom_call.1} parent=31 // pred_fallthru
          _
        %s511 = sand.u32 %s111, 1
        %s512 = scalar_lea.sflag [#allocation6], %s511
        %s513 = sand.u32 %s111, 1
        %s514 = smul.addr %s513, 8
        %s515 = scalar_lea.vmem [#allocation10], %s514
        // Predicated region
        $region53: #{tpu_custom_call.1} parent=31 // pred_check
          %p516 = pneg %p121
        $region54: #{tpu_custom_call.1} parent=31 // pred_check_branch
          %518 = sbr.rel (%p516) target = $region56
        $region55: #{tpu_custom_call.1} parent=31 // pred_region
          %s520 = ssub.s32 128, 128
          %521 = vsyncadd %s512, %s520
          %s522 = smul.addr %s25, 128
          %s523 = scalar_lea.hbm %s3, %s522
          %s525 = sshll.u32 %s515, 4
          %s526 = int_to_ptr.vmem [resolvable:$true] %s525
          %528 = dma.vmem_to_hbm [thread:$0]  %s526, 128, %s523, %s512
        $region56: #{tpu_custom_call.1} parent=31 // pred_fallthru
          _
      $region32: #{tpu_custom_call.1} parent=5 // pred_fallthru
        _
      %p529 = scmp.le.s32.totalorder 2, %s16
      // Predicated region
      $region57: #{tpu_custom_call.1} parent=5 // pred_check
        %p530 = pneg %p529
      $region58: #{tpu_custom_call.1} parent=5 // pred_check_branch
        %532 = sbr.rel (%p530) target = $region60
      $region59: #{tpu_custom_call.1} parent=5 // pred_region
        %s533 = ssub.s32 %s16, 2
        // Predicated region
        $region61: #{tpu_custom_call.1} parent=59 // pred_check
          %p534 = pneg %p127
        $region62: #{tpu_custom_call.1} parent=59 // pred_check_branch
          %536 = sbr.rel (%p534) target = $region64
        $region63: #{tpu_custom_call.1} parent=59 // pred_region
          %s537 = sand.u32 %s112, 1
          %s538 = scalar_lea.sflag [#allocation6], %s537
          %s539 = sand.u32 %s112, 1
          %s540 = smul.addr %s539, 8
          %s541 = scalar_lea.vmem [#allocation10], %s540
          %542 = dma.done %s538, 128
        $region64: #{tpu_custom_call.1} parent=59 // pred_fallthru
          _
      $region60: #{tpu_custom_call.1} parent=5 // pred_fallthru
        _
    $region6: #{tpu_custom_call.1} parent=1 // loop_footer
      %s20 = sadd.s32 1, %s16
    $region7: #{tpu_custom_call.1} parent=1 // loop_footer_branch
      %15 = sbr.rel target = $region3
    $region8: #{tpu_custom_call.1} parent=1 // loop_exit
      _
    %543 = vsyncpa [#allocation5], 1
    %s544 = scalar_lea.sflag [#allocation5], 1
    %545 = vsyncpa %s544, 1
    %546 = vsyncpa [#allocation8], 1
    %547 = vsyncpa [#allocation6], 1
    %s548 = scalar_lea.sflag [#allocation6], 1
    %549 = vsyncpa %s548, 1

</llo_original>
